<compile_context>
chip_gen: v7x
topology: tpu7x:2x2x1
jax: 0.10.0
libtpu: 0.0.40
codegen_flags: <defaults>
</compile_context>

<pallas_src>
import jax
import jax.numpy as jnp
from jax.experimental import pallas as pl
from jax.experimental.pallas import tpu as pltpu


_SMALL_INPUT_BYTES = 256 * 1024     # below this, XLA native concat wins
_MIN_GRID_STEPS = 3                 # need >= 3 steps for read/copy/write overlap


def _generation_tuning():
    """(target_output_block_bytes, vmem_limit_bytes) per TPU generation."""
    kind = ""
    try:
        kind = jax.devices()[0].device_kind.lower()
    except Exception:
        pass
    if "v7" in kind:
        # v7x: 64 MiB per-TC VMEM, ~3.2 TB/s HBM -> bigger blocks amortize
        # the ~0.35us/step pipeline overhead; keep resident well under 64 MiB.
        return 8 << 20, 48 << 20
    if "v6" in kind:
        # v6e: 128 MiB VMEM -> free headroom for larger blocks.
        return 8 << 20, 64 << 20
    # v5e / unknown: 4 MiB blocks are already ~10us of DMA; stay conservative.
    return 4 << 20, 32 << 20


def _make_concat_kernel(widths, aligned):
    """Kernel writing each input ref into its lane-slab of the output tile."""
    offsets = []
    off = 0
    for w in widths:
        offsets.append(off)
        off += w

    if aligned:
        # Every offset/width is a multiple of 128 -> static lane slices lower
        # to unmasked vst; no need to materialize the full tile.
        def kernel(*refs):
            out_ref = refs[-1]
            for in_ref, o, w in zip(refs[:-1], offsets, widths):
                out_ref[:, o:o + w] = in_ref[...]
    else:
        # Unaligned widths: build the output tile once (lane concat on the
        # otherwise-idle XLU) and do a single lane-dense full-width store,
        # avoiding N masked vst.msk partial stores.
        def kernel(*refs):
            out_ref = refs[-1]
            tile = jnp.concatenate([r[...] for r in refs[:-1]], axis=-1)
            out_ref[...] = tile

    return kernel


def concatenate_last_dim(xs, *, row_tile=None, force_pallas=False):
    """Pallas equivalent of torch.cat(xs, dim=-1)."""
    xs = list(xs)
    if len(xs) == 1:
        return xs[0]

    lead_shape = tuple(xs[0].shape[:-1])
    dtype = xs[0].dtype
    for x in xs:
        assert tuple(x.shape[:-1]) == lead_shape, "leading dims must match for cat"
        assert x.dtype == dtype, "dtypes must match for cat"

    widths = [int(x.shape[-1]) for x in xs]
    W = sum(widths)
    out_shape = lead_shape + (W,)

    itemsize = jnp.dtype(dtype).itemsize
    total_bytes = sum(int(x.size) * itemsize for x in xs)
    if not force_pallas and total_bytes < _SMALL_INPUT_BYTES:
        # KB-scale inputs: pallas_call launch overhead dominates.
        return jnp.concatenate(xs, axis=-1)

    # Flatten leading dims into one row axis; concat axis stays on lanes.
    R = 1
    for d in lead_shape:
        R *= int(d)
    if R == 0 or W == 0:
        return jnp.concatenate(xs, axis=-1)
    xs2d = [x.reshape(R, w) for x, w in zip(xs, widths)]

    target_block_bytes, vmem_limit_bytes = _generation_tuning()

    # dtype-aware sublane rounding: 8 for 4-byte, 16 for 2-byte, 32 for 1-byte
    sublane_mult = max(8, 32 // itemsize)

    row_bytes = W * itemsize
    # Double-buffered resident footprint per row: 2 * (inputs + output).
    per_row_resident = 4 * row_bytes
    budget = (vmem_limit_bytes * 3) // 4          # headroom for scratch/sems
    tr_vmem = budget // max(1, per_row_resident)

    if tr_vmem < min(R, sublane_mult):
        # Even a minimal row tile blows the VMEM budget (huge W).
        # TODO(synk): tile the lane axis too (2-D grid over 128-aligned column
        # slabs) instead of falling back to XLA's native concat here.
        return jnp.concatenate(xs, axis=-1)

    # --- row-tile selection -------------------------------------------------
    if row_tile is not None:
        tr = max(1, int(row_tile))
    else:
        tr = max(1, target_block_bytes // max(1, row_bytes))
        if R >= _MIN_GRID_STEPS * sublane_mult:
            # Keep at least _MIN_GRID_STEPS grid steps so input-DMA / copy /
            # output-DMA actually overlap instead of serializing.
            tr = min(tr, pl.cdiv(R, _MIN_GRID_STEPS))

    tr = min(tr, tr_vmem, R)
    if tr < R:
        tr = max(sublane_mult, (tr // sublane_mult) * sublane_mult)
        tr = min(tr, R)
    # (tr == R, i.e. block == full dim, is always a legal block shape.)

    grid_steps = pl.cdiv(R, tr)
    if not force_pallas and grid_steps < _MIN_GRID_STEPS:
        # Too few rows to pipeline; XLA native concat is at least as good.
        return jnp.concatenate(xs, axis=-1)

    aligned = all(w % 128 == 0 for w in widths)
    kernel = _make_concat_kernel(widths, aligned)

    # Note: index maps do not close over the loop variable (no late binding).
    in_specs = [pl.BlockSpec((tr, w), lambda i: (i, 0)) for w in widths]
    out_specs = pl.BlockSpec((tr, W), lambda i: (i, 0))

    out2d = pl.pallas_call(
        kernel,
        out_shape=jax.ShapeDtypeStruct((R, W), dtype),
        grid=(grid_steps,),
        in_specs=in_specs,
        out_specs=out_specs,
        compiler_params=pltpu.CompilerParams(
            dimension_semantics=("parallel",),   # v7x: shard row slabs over 2 TCs
            vmem_limit_bytes=vmem_limit_bytes,
        ),
    )(*xs2d)

    # TODO(synk): for very large 128-aligned inputs, a direct HBM->output-slab
    # path (memory_space=pl.ANY + make_async_copy, a couple of DMAs in flight)
    # would skip the VMEM round-trip entirely; only worth it if the gridded
    # copy measures below ~85-90% of the (read+write)/HBM-BW roofline.
    return out2d.reshape(out_shape)


def concatenate(xs, dim=-1):
    """General wrapper mirroring Concatenate.forward (dim defaults to -1)."""
    xs = list(xs)
    ndim = xs[0].ndim
    d = dim if dim >= 0 else dim + ndim
    if d == ndim - 1:
        return concatenate_last_dim(xs)
    # TODO(synk): non-last-dim concat would need a transpose round-trip or a
    # sublane-axis kernel; use XLA's native concat for those dims.
    return jnp.concatenate(xs, axis=d)


if __name__ == "__main__":
    key = jax.random.PRNGKey(0)
    k1, k2, k3, k4, k5, k6, k7 = jax.random.split(key, 7)

    # Mimic the test-file preamble `x = torch.unsqueeze(x, dim=0)`:
    # build (seq, feature) tensors and unsqueeze a leading batch dim of 1.
    seq = 8

    # 1) f32, 128-aligned widths -> unmasked per-slab store path.
    a = jnp.expand_dims(jax.random.normal(k1, (seq, 128), dtype=jnp.float32), 0)
    b = jnp.expand_dims(jax.random.normal(k2, (seq, 128), dtype=jnp.float32), 0)
    c = jnp.expand_dims(jax.random.normal(k3, (seq, 256), dtype=jnp.float32), 0)
    out = jax.block_until_ready(concatenate_last_dim([a, b, c], force_pallas=True))
    ref = jnp.concatenate([a, b, c], axis=-1)
    assert out.shape == ref.shape, (out.shape, ref.shape)
    assert jnp.array_equal(out, ref), "mismatch (f32, aligned widths)"

    # 2) f32, non-128-multiple widths -> single full-width tile store path.
    d = jnp.expand_dims(jax.random.normal(k4, (seq, 96), dtype=jnp.float32), 0)
    e = jnp.expand_dims(jax.random.normal(k5, (seq, 40), dtype=jnp.float32), 0)
    out2 = jax.block_until_ready(concatenate_last_dim([d, e], force_pallas=True))
    ref2 = jnp.concatenate([d, e], axis=-1)
    assert out2.shape == ref2.shape, (out2.shape, ref2.shape)
    assert jnp.array_equal(out2, ref2), "mismatch (f32, unaligned widths)"

    # 3) bf16 with odd widths/offsets -> sublane-packed dtype, full-tile store.
    f = jnp.expand_dims(jax.random.normal(k6, (seq, 72), dtype=jnp.bfloat16), 0)
    g = jnp.expand_dims(jax.random.normal(k7, (seq, 56), dtype=jnp.bfloat16), 0)
    out3 = jax.block_until_ready(concatenate_last_dim([f, g], force_pallas=True))
    ref3 = jnp.concatenate([f, g], axis=-1)
    assert out3.shape == ref3.shape, (out3.shape, ref3.shape)
    assert jnp.array_equal(out3, ref3), "mismatch (bf16, unaligned widths)"

    # 4) int8 with odd widths -> 32-wide sublane packing, full-tile store.
    h = jnp.expand_dims(
        (jnp.arange(seq * 48, dtype=jnp.int32).reshape(seq, 48) % 251 - 125
         ).astype(jnp.int8), 0)
    i = jnp.expand_dims(
        (jnp.arange(seq * 80, dtype=jnp.int32).reshape(seq, 80) % 127 - 63
         ).astype(jnp.int8), 0)
    out4 = jax.block_until_ready(concatenate_last_dim([h, i], force_pallas=True))
    ref4 = jnp.concatenate([h, i], axis=-1)
    assert out4.shape == ref4.shape, (out4.shape, ref4.shape)
    assert jnp.array_equal(out4, ref4), "mismatch (int8, unaligned widths)"

    # 5) Larger case through the general wrapper (multi-step grid path).
    big_a = jax.random.normal(k1, (4, 512, 384), dtype=jnp.float32)
    big_b = jax.random.normal(k2, (4, 512, 256), dtype=jnp.float32)
    out5 = jax.block_until_ready(concatenate([big_a, big_b], dim=-1))
    ref5 = jnp.concatenate([big_a, big_b], axis=-1)
    assert out5.shape == ref5.shape, (out5.shape, ref5.shape)
    assert jnp.array_equal(out5, ref5), "mismatch (large multi-step grid)"

    print("KERNEL_OK")
</pallas_src>

<mosaic_0001>
module attributes {stable_mosaic.version = 11 : i64} {
  func.func @kernel(%arg0: i32, %arg1: memref<8x128xf32, #tpu.memory_space<vmem>>, %arg2: memref<8x128xf32, #tpu.memory_space<vmem>>, %arg3: memref<8x256xf32, #tpu.memory_space<vmem>>, %arg4: memref<8x512xf32, #tpu.memory_space<vmem>>) attributes {dimension_semantics = [#tpu.dimension_semantics<parallel>], iteration_bounds = array<i64: 1>, scalar_prefetch = 0 : i64, scratch_operands = 0 : i64, tpu.core_type = #tpu.core_type<tc>, window_params = [{transform_indices = @transform_0, window_bounds = array<i64: 8, 128>}, {transform_indices = @transform_1, window_bounds = array<i64: 8, 128>}, {transform_indices = @transform_2, window_bounds = array<i64: 8, 256>}, {transform_indices = @transform_3, window_bounds = array<i64: 8, 512>}]} {
    %c0 = arith.constant 0 : index
    %c0_0 = arith.constant 0 : index
    %0 = vector.load %arg1[%c0, %c0_0] : memref<8x128xf32, #tpu.memory_space<vmem>>, vector<8x128xf32>
    %c0_1 = arith.constant 0 : index
    %c0_2 = arith.constant 0 : index
    %1 = vector.load %arg4[%c0_1, %c0_2] : memref<8x512xf32, #tpu.memory_space<vmem>>, vector<8x128xf32>
    tpu.vector_store %arg4[%c0_1, %c0_2], %0 {strides = array<i32>} : memref<8x512xf32, #tpu.memory_space<vmem>>, vector<8x128xf32>,
    %c0_3 = arith.constant 0 : index
    %c0_4 = arith.constant 0 : index
    %2 = vector.load %arg2[%c0_3, %c0_4] : memref<8x128xf32, #tpu.memory_space<vmem>>, vector<8x128xf32>
    %c0_5 = arith.constant 0 : index
    %c128 = arith.constant 128 : index
    %3 = vector.load %arg4[%c0_5, %c128] : memref<8x512xf32, #tpu.memory_space<vmem>>, vector<8x128xf32>
    tpu.vector_store %arg4[%c0_5, %c128], %2 {strides = array<i32>} : memref<8x512xf32, #tpu.memory_space<vmem>>, vector<8x128xf32>,
    %c0_6 = arith.constant 0 : index
    %c0_7 = arith.constant 0 : index
    %4 = vector.load %arg3[%c0_6, %c0_7] : memref<8x256xf32, #tpu.memory_space<vmem>>, vector<8x256xf32>
    %c0_8 = arith.constant 0 : index
    %c256 = arith.constant 256 : index
    %5 = vector.load %arg4[%c0_8, %c256] : memref<8x512xf32, #tpu.memory_space<vmem>>, vector<8x256xf32>
    tpu.vector_store %arg4[%c0_8, %c256], %4 {strides = array<i32>} : memref<8x512xf32, #tpu.memory_space<vmem>>, vector<8x256xf32>,
    return
  }
  func.func @transform_0(%arg0: i32) -> (i32, i32) {
    %c0_i32 = arith.constant 0 : i32
    %c0_i32_0 = arith.constant 0 : i32
    return %arg0, %c0_i32 : i32, i32
  }
  func.func @transform_1(%arg0: i32) -> (i32, i32) {
    %c0_i32 = arith.constant 0 : i32
    %c0_i32_0 = arith.constant 0 : i32
    return %arg0, %c0_i32 : i32, i32
  }
  func.func @transform_2(%arg0: i32) -> (i32, i32) {
    %c0_i32 = arith.constant 0 : i32
    %c0_i32_0 = arith.constant 0 : i32
    return %arg0, %c0_i32 : i32, i32
  }
  func.func @transform_3(%arg0: i32) -> (i32, i32) {
    %c0_i32 = arith.constant 0 : i32
    %c0_i32_0 = arith.constant 0 : i32
    return %arg0, %c0_i32 : i32, i32
  }
}

</mosaic_0001>

<llo_original>
// kernel: tpu_custom_call.1
$region0: #{tpu_custom_call.1}
  #allocation0 [shape = 'u32[]', space=smem, size = 0x4, offset = 0x4, fixed_abs, tag = 'smem constant byte address 0x4 - core index']
  #allocation1 [shape = 'u32[144,128]{1,0:T(1,128)}', space=vmem, size = 0x12000, scoped, tag = 'internal scratch']
  %s0 = inlined_call_operand.hbm [shape: f32[8,128], index: 0, kind: input, shape index: {}]
  %s1 = inlined_call_operand.hbm [shape: f32[8,128], index: 1, kind: input, shape index: {}]
  %s2 = inlined_call_operand.hbm [shape: f32[8,256], index: 2, kind: input, shape index: {}]
  %s3 = inlined_call_operand.hbm [shape: f32[8,512], index: 3, kind: output, shape index: {}]
  %s4 = sld [smem:[#allocation0]]
  $region34: #{tpu_custom_call.1} parent=0
    _
  %s6 = ssub.s32 1, %s4
  %s7 = scalar_select 0, %s6, %s4
  $region1: #{tpu_custom_call.1} parent=0
    #allocation2 [shape = 'u8[4096]{0}', space=vmem, size = 0x1000, scoped, tag = 'input window, operand 0, single buffered']
    #allocation3 [shape = 's32[1]{0}', space=sflag, size = 0x4, scoped, tag = 'scoped memory for tpu_custom_call.1']
    #allocation4 [shape = 's32[1]{0}', space=sflag, size = 0x4, scoped, tag = 'scoped memory for tpu_custom_call.1']
    #allocation5 [shape = 'u8[4096]{0}', space=vmem, size = 0x1000, scoped, tag = 'input window, operand 1, single buffered']
    #allocation6 [shape = 's32[1]{0}', space=sflag, size = 0x4, scoped, tag = 'scoped memory for tpu_custom_call.1']
    #allocation7 [shape = 'u8[8192]{0}', space=vmem, size = 0x2000, scoped, tag = 'input window, operand 2, single buffered']
    #allocation8 [shape = 'u8[16384]{0}', space=vmem, size = 0x4000, scoped, tag = 'output window, operand 0, single buffered']
    %8 = vsyncpa [#allocation3], 0
    %9 = vsyncpa [#allocation6], 0
    %10 = vsyncpa [#allocation4], 0
    // Predicated region
    $region2: #{tpu_custom_call.1} parent=1 // pred_check
      _
    $region3: #{tpu_custom_call.1} parent=1 // pred_check_branch
      %12 = sbr.rel (0) target = $region5
    $region4: #{tpu_custom_call.1} parent=1 // pred_region
      %s14 = ssub.s32 128, 128
      %15 = vsyncadd [#allocation3], %s14
      %s17 = sshll.u32 [#allocation2], 4
      %s18 = int_to_ptr.vmem [resolvable:$true] %s17
      %20 = dma.hbm_to_vmem [thread:$0]  %s0, 128, %s18, [#allocation3]
    $region5: #{tpu_custom_call.1} parent=1 // pred_fallthru
      _
    // Predicated region
    $region6: #{tpu_custom_call.1} parent=1 // pred_check
      _
    $region7: #{tpu_custom_call.1} parent=1 // pred_check_branch
      %22 = sbr.rel (0) target = $region9
    $region8: #{tpu_custom_call.1} parent=1 // pred_region
      %s24 = ssub.s32 128, 128
      %25 = vsyncadd [#allocation6], %s24
      %s27 = sshll.u32 [#allocation5], 4
      %s28 = int_to_ptr.vmem [resolvable:$true] %s27
      %30 = dma.hbm_to_vmem [thread:$0]  %s1, 128, %s28, [#allocation6]
    $region9: #{tpu_custom_call.1} parent=1 // pred_fallthru
      _
    // Predicated region
    $region10: #{tpu_custom_call.1} parent=1 // pred_check
      _
    $region11: #{tpu_custom_call.1} parent=1 // pred_check_branch
      %32 = sbr.rel (0) target = $region13
    $region12: #{tpu_custom_call.1} parent=1 // pred_region
      %s34 = ssub.s32 256, 256
      %35 = vsyncadd [#allocation6], %s34
      %s37 = sshll.u32 [#allocation7], 4
      %s38 = int_to_ptr.vmem [resolvable:$true] %s37
      %40 = dma.hbm_to_vmem [thread:$0]  %s2, 256, %s38, [#allocation6]
    $region13: #{tpu_custom_call.1} parent=1 // pred_fallthru
      _
    // Predicated region
    $region14: #{tpu_custom_call.1} parent=1 // pred_check
      _
    $region15: #{tpu_custom_call.1} parent=1 // pred_check_branch
      %42 = sbr.rel (0) target = $region17
    $region16: #{tpu_custom_call.1} parent=1 // pred_region
      %43 = dma.done [#allocation3], 128
    $region17: #{tpu_custom_call.1} parent=1 // pred_fallthru
      _
    // Predicated region
    $region18: #{tpu_custom_call.1} parent=1 // pred_check
      _
    $region19: #{tpu_custom_call.1} parent=1 // pred_check_branch
      %45 = sbr.rel (0) target = $region21
    $region20: #{tpu_custom_call.1} parent=1 // pred_region
      %46 = dma.done [#allocation6], 128
    $region21: #{tpu_custom_call.1} parent=1 // pred_fallthru
      _
    // Predicated region
    $region22: #{tpu_custom_call.1} parent=1 // pred_check
      _
    $region23: #{tpu_custom_call.1} parent=1 // pred_check_branch
      %48 = sbr.rel (0) target = $region25
    $region24: #{tpu_custom_call.1} parent=1 // pred_region
      %49 = dma.done [#allocation6], 256
    $region25: #{tpu_custom_call.1} parent=1 // pred_fallthru
      _
    %v50 = vld [vmem:[#allocation2] sm:$0xff]
    %51 = vst [vmem:[#allocation8] sm:$0xff] %v50
    %v52 = vld [vmem:[#allocation5] sm:$0xff]
    %53 = vst [vmem:[#allocation8 + $0x8] sm:$0xff] %v52
    %v54 = vld [vmem:[#allocation7] sm:$0xff]
    %v55 = vld [vmem:[#allocation7 + $0x8] sm:$0xff]
    %56 = vst [vmem:[#allocation8 + $0x10] sm:$0xff] %v54
    %57 = vst [vmem:[#allocation8 + $0x18] sm:$0xff] %v55
    // Predicated region
    $region26: #{tpu_custom_call.1} parent=1 // pred_check
      _
    $region27: #{tpu_custom_call.1} parent=1 // pred_check_branch
      %59 = sbr.rel (0) target = $region29
    $region28: #{tpu_custom_call.1} parent=1 // pred_region
      %s61 = ssub.s32 512, 512
      %62 = vsyncadd [#allocation4], %s61
      %s64 = sshll.u32 [#allocation8], 4
      %s65 = int_to_ptr.vmem [resolvable:$true] %s64
      %67 = dma.vmem_to_hbm [thread:$0]  %s65, 512, %s3, [#allocation4]
    $region29: #{tpu_custom_call.1} parent=1 // pred_fallthru
      _
    // Predicated region
    $region30: #{tpu_custom_call.1} parent=1 // pred_check
      _
    $region31: #{tpu_custom_call.1} parent=1 // pred_check_branch
      %69 = sbr.rel (0) target = $region33
    $region32: #{tpu_custom_call.1} parent=1 // pred_region
      %70 = dma.done [#allocation4], 512
    $region33: #{tpu_custom_call.1} parent=1 // pred_fallthru
      _
    %71 = vsyncpa [#allocation3], 1
    %72 = vsyncpa [#allocation6], 1
    %73 = vsyncpa [#allocation4], 1

</llo_original>
